<compile_context>
chip_gen: v5e
topology: v5e:2x2
jax: 0.10.0
libtpu: 0.0.40
codegen_flags: <defaults>
</compile_context>

<pallas_src>
import jax
import jax.numpy as jnp
from jax.experimental import pallas as pl
from jax.experimental.pallas import tpu as pltpu

_IN_DIM = 4
_HIDDEN = 24
_SUBLANE = 8
_LANE = 128


def _round_up(n, m):
    return (n + m - 1) // m * m


def mlp_softmax_kernel(x_ref, w1_ref, b1_ref, w2_ref, b2_ref, w3_ref, b3_ref,
                       o_ref):
    # Transposed layout: x_ref is (8, TILE_B) with contraction rows 4..7 zero.
    x = x_ref[...]

    # fc1 + relu (MXU; tiny K=8 contraction, MXU has plenty of slack).
    h1 = jnp.dot(w1_ref[...], x, preferred_element_type=jnp.float32) + b1_ref[...]
    h1 = jnp.maximum(h1, 0.0)                               # (24, TILE_B)

    # fc2 + relu
    h2 = jnp.dot(w2_ref[...], h1, preferred_element_type=jnp.float32) + b2_ref[...]
    h2 = jnp.maximum(h2, 0.0)                               # (24, TILE_B)

    # fc3: padded output rows have zero weights and a -1e30 bias (f32 only!),
    # so they vanish under the softmax below.
    logits = (jnp.dot(w3_ref[...], h2, preferred_element_type=jnp.float32)
              + b3_ref[...])                                # (OUT_PAD, TILE_B)

    # softmax over the feature axis (= sublane axis here; PyTorch dim=1).
    m = jnp.max(logits, axis=0, keepdims=True)              # (1, TILE_B)
    e = jnp.exp(logits - m)                                 # (OUT_PAD, TILE_B)
    inv = 1.0 / jnp.sum(e, axis=0, keepdims=True)           # exact reciprocal
    o_ref[...] = e * inv


def model_forward(x, padded_params, out_nodes, *, tile_b=None):
    """x: (B, 4) float32. Returns (B, out_nodes) float32 softmax probabilities."""
    p = padded_params
    w1, b1, w2, b2, w3, b3 = p["w1"], p["b1"], p["w2"], p["b2"], p["w3"], p["b3"]
    in_pad = w1.shape[1]      # 8
    out_pad = w3.shape[0]     # out_nodes rounded up to a sublane multiple
    B = x.shape[0]

    if tile_b is None:
        # Large tiles amortize the ~0.35us/step grid overhead; working set at
        # 4096 is still only a few MiB (well under every scoped-VMEM default).
        # Aim for >=2 grid steps so the parallel batch axis can use both v7x
        # TensorCores (no-op on single-core v5e/v6e).
        cap = 4096
        half = _round_up(int(pl.cdiv(B, 2)), _LANE)
        tile_b = max(_LANE, min(cap, half))
    tile_b = _round_up(tile_b, _LANE)

    b_pad = _round_up(B, tile_b)
    # One cheap fused transpose+pad in XLA: (B, 4) -> (8, b_pad). Padded
    # contraction rows and padded batch columns are zero.
    x_t = jnp.pad(x.T, ((0, in_pad - x.shape[1]), (0, b_pad - B)))
    grid = (b_pad // tile_b,)

    batch_spec = lambda rows: pl.BlockSpec((rows, tile_b), lambda i: (0, i))
    const_spec = lambda shape: pl.BlockSpec(shape, lambda i: (0, 0))

    out = pl.pallas_call(
        mlp_softmax_kernel,
        out_shape=jax.ShapeDtypeStruct((out_pad, b_pad), jnp.float32),
        grid=grid,
        in_specs=[
            batch_spec(in_pad),        # x^T: tiled over the batch (lane) axis
            const_spec(w1.shape),      # (24, 8)        VMEM-resident
            const_spec(b1.shape),      # (24, 1)
            const_spec(w2.shape),      # (24, 24)
            const_spec(b2.shape),      # (24, 1)
            const_spec(w3.shape),      # (out_pad, 24)
            const_spec(b3.shape),      # (out_pad, 1)
        ],
        out_specs=batch_spec(out_pad),  # lane-dense (out_pad, TILE_B) stores
        compiler_params=pltpu.CompilerParams(
            dimension_semantics=("parallel",)),
    )(x_t, w1, b1, w2, b2, w3, b3)

    # (out_pad, b_pad) -> (B, out_nodes): tiny slice + transpose, ~4*out_pad
    # bytes per row instead of the old 512 B/row padded-output round trip.
    return out[:out_nodes, :B].T


def init_params(key, in_dim=4, hidden=24, out_nodes=10):
    """nn.Linear-style U(-1/sqrt(fan_in), 1/sqrt(fan_in)) init.

    Weights are stored in PyTorch's (out_features, in_features) layout so the
    kernel computes W @ x_t directly in the transposed layout.
    Returns (padded_params, raw_params): padded once (statically) for the
    kernel; raw for the pure-JAX reference.
    """
    keys = jax.random.split(key, 6)

    def linear(kw, kb, fan_in, fan_out):
        bound = 1.0 / jnp.sqrt(jnp.asarray(fan_in, jnp.float32))
        w = jax.random.uniform(kw, (fan_out, fan_in), jnp.float32, -bound, bound)
        b = jax.random.uniform(kb, (fan_out,), jnp.float32, -bound, bound)
        return w, b

    w1, b1 = linear(keys[0], keys[1], in_dim, hidden)      # (24, 4), (24,)
    w2, b2 = linear(keys[2], keys[3], hidden, hidden)      # (24, 24), (24,)
    w3, b3 = linear(keys[4], keys[5], hidden, out_nodes)   # (out_nodes, 24)

    raw = {"w1": w1, "b1": b1, "w2": w2, "b2": b2, "w3": w3, "b3": b3}

    in_pad = _round_up(in_dim, _SUBLANE)      # 8
    out_pad = _round_up(out_nodes, _SUBLANE)  # 16 for out_nodes=10

    padded = {
        # zero-padded contraction columns (match the zero-padded x rows)
        "w1": jnp.pad(w1, ((0, 0), (0, in_pad - in_dim))),       # (24, 8)
        "b1": b1[:, None],                                       # (24, 1)
        "w2": w2,                                                # (24, 24)
        "b2": b2[:, None],                                       # (24, 1)
        # zero-padded output rows; padded bias rows get -1e30 so they are
        # exactly 0 after softmax (requires f32 logits).
        "w3": jnp.pad(w3, ((0, out_pad - out_nodes), (0, 0))),   # (16, 24)
        "b3": jnp.concatenate(
            [b3, jnp.full((out_pad - out_nodes,), -1e30, jnp.float32)])[:, None],
    }
    return padded, raw


def reference_forward(x, p):
    h1 = jnp.maximum(x @ p["w1"].T + p["b1"], 0.0)
    h2 = jnp.maximum(h1 @ p["w2"].T + p["b2"], 0.0)
    logits = h2 @ p["w3"].T + p["b3"]
    return jax.nn.softmax(logits, axis=1)


if __name__ == "__main__":
    key = jax.random.PRNGKey(0)
    k_x, k_x2, k_p = jax.random.split(key, 3)

    B, in_dim, out_nodes = 8, 4, 10
    padded_params, raw_params = init_params(k_p, in_dim=in_dim, hidden=24,
                                            out_nodes=out_nodes)

    # Small primary check (B=8, single tile).
    x = jax.random.normal(k_x, (B, in_dim), jnp.float32)
    out = jax.block_until_ready(model_forward(x, padded_params, out_nodes))
    ref = reference_forward(x, raw_params)
    assert out.shape == (B, out_nodes)
    # Tolerance covers MXU default-precision differences between W@x and x@W^T.
    assert jnp.allclose(out, ref, atol=3e-3, rtol=3e-3), "mismatch vs reference"
    # Exact reciprocal -> rows sum to 1 to float32 rounding.
    assert jnp.allclose(jnp.sum(out, axis=1), 1.0, atol=1e-5), "rows must sum to 1"

    # Larger check: multiple grid steps + batch padding (tile_b=1280, grid=(2,)).
    B2 = 2500
    x2 = jax.random.normal(k_x2, (B2, in_dim), jnp.float32)
    out2 = jax.block_until_ready(model_forward(x2, padded_params, out_nodes))
    ref2 = reference_forward(x2, raw_params)
    assert out2.shape == (B2, out_nodes)
    assert jnp.allclose(out2, ref2, atol=3e-3, rtol=3e-3), "batched mismatch"
    assert jnp.allclose(jnp.sum(out2, axis=1), 1.0, atol=1e-5)

    print("KERNEL_OK")
</pallas_src>

<mosaic_0001>
module attributes {stable_mosaic.version = 11 : i64} {
  func.func @mlp_softmax_kernel(%arg0: i32, %arg1: memref<8x128xf32, #tpu.memory_space<vmem>>, %arg2: memref<24x8xf32, #tpu.memory_space<vmem>>, %arg3: memref<24x1xf32, #tpu.memory_space<vmem>>, %arg4: memref<24x24xf32, #tpu.memory_space<vmem>>, %arg5: memref<24x1xf32, #tpu.memory_space<vmem>>, %arg6: memref<16x24xf32, #tpu.memory_space<vmem>>, %arg7: memref<16x1xf32, #tpu.memory_space<vmem>>, %arg8: memref<16x128xf32, #tpu.memory_space<vmem>>) attributes {dimension_semantics = [#tpu.dimension_semantics<parallel>], iteration_bounds = array<i64: 1>, scalar_prefetch = 0 : i64, scratch_operands = 0 : i64, tpu.core_type = #tpu.core_type<tc>, window_params = [{transform_indices = @transform_0, window_bounds = array<i64: 8, 128>}, {pipeline_mode = #tpu.pipeline_mode<synchronous>, transform_indices = @transform_1, window_bounds = array<i64: 24, 8>}, {pipeline_mode = #tpu.pipeline_mode<synchronous>, transform_indices = @transform_2, window_bounds = array<i64: 24, 1>}, {pipeline_mode = #tpu.pipeline_mode<synchronous>, transform_indices = @transform_3, window_bounds = array<i64: 24, 24>}, {pipeline_mode = #tpu.pipeline_mode<synchronous>, transform_indices = @transform_4, window_bounds = array<i64: 24, 1>}, {pipeline_mode = #tpu.pipeline_mode<synchronous>, transform_indices = @transform_5, window_bounds = array<i64: 16, 24>}, {pipeline_mode = #tpu.pipeline_mode<synchronous>, transform_indices = @transform_6, window_bounds = array<i64: 16, 1>}, {transform_indices = @transform_7, window_bounds = array<i64: 16, 128>}]} {
    %c0 = arith.constant 0 : index
    %c0_0 = arith.constant 0 : index
    %0 = vector.load %arg1[%c0, %c0_0] : memref<8x128xf32, #tpu.memory_space<vmem>>, vector<8x128xf32>
    %c0_1 = arith.constant 0 : index
    %c0_2 = arith.constant 0 : index
    %1 = vector.load %arg2[%c0_1, %c0_2] : memref<24x8xf32, #tpu.memory_space<vmem>>, vector<24x8xf32>
    %cst = arith.constant dense<0.000000e+00> : vector<24x128xf32>
    %2 = tpu.matmul %1, %0, %cst {dimension_numbers = #tpu.dot_dimension_numbers<[1], [0], [0], [1], [0, 0, 1, 1], [], []>} : vector<24x8xf32>, vector<8x128xf32>, vector<24x128xf32> -> vector<24x128xf32>
    %c0_3 = arith.constant 0 : index
    %c0_4 = arith.constant 0 : index
    %3 = vector.load %arg3[%c0_3, %c0_4] : memref<24x1xf32, #tpu.memory_space<vmem>>, vector<24x1xf32>
    %4 = vector.broadcast %3 : vector<24x1xf32> to vector<24x128xf32>
    %5 = arith.addf %2, %4 : vector<24x128xf32>
    %cst_5 = arith.constant 0.000000e+00 : f32
    %6 = vector.broadcast %cst_5 : f32 to vector<24x128xf32>
    %7 = arith.maximumf %5, %6 : vector<24x128xf32>
    %c0_6 = arith.constant 0 : index
    %c0_7 = arith.constant 0 : index
    %8 = vector.load %arg4[%c0_6, %c0_7] : memref<24x24xf32, #tpu.memory_space<vmem>>, vector<24x24xf32>
    %cst_8 = arith.constant dense<0.000000e+00> : vector<24x128xf32>
    %9 = tpu.matmul %8, %7, %cst_8 {dimension_numbers = #tpu.dot_dimension_numbers<[1], [0], [0], [1], [0, 0, 1, 1], [], []>} : vector<24x24xf32>, vector<24x128xf32>, vector<24x128xf32> -> vector<24x128xf32>
    %c0_9 = arith.constant 0 : index
    %c0_10 = arith.constant 0 : index
    %10 = vector.load %arg5[%c0_9, %c0_10] : memref<24x1xf32, #tpu.memory_space<vmem>>, vector<24x1xf32>
    %11 = vector.broadcast %10 : vector<24x1xf32> to vector<24x128xf32>
    %12 = arith.addf %9, %11 : vector<24x128xf32>
    %cst_11 = arith.constant 0.000000e+00 : f32
    %13 = vector.broadcast %cst_11 : f32 to vector<24x128xf32>
    %14 = arith.maximumf %12, %13 : vector<24x128xf32>
    %c0_12 = arith.constant 0 : index
    %c0_13 = arith.constant 0 : index
    %15 = vector.load %arg6[%c0_12, %c0_13] : memref<16x24xf32, #tpu.memory_space<vmem>>, vector<16x24xf32>
    %cst_14 = arith.constant dense<0.000000e+00> : vector<16x128xf32>
    %16 = tpu.matmul %15, %14, %cst_14 {dimension_numbers = #tpu.dot_dimension_numbers<[1], [0], [0], [1], [0, 0, 1, 1], [], []>} : vector<16x24xf32>, vector<24x128xf32>, vector<16x128xf32> -> vector<16x128xf32>
    %c0_15 = arith.constant 0 : index
    %c0_16 = arith.constant 0 : index
    %17 = vector.load %arg7[%c0_15, %c0_16] : memref<16x1xf32, #tpu.memory_space<vmem>>, vector<16x1xf32>
    %18 = vector.broadcast %17 : vector<16x1xf32> to vector<16x128xf32>
    %19 = arith.addf %16, %18 : vector<16x128xf32>
    %cst_17 = arith.constant dense<0xFF800000> : vector<128xf32>
    %20 = vector.multi_reduction <maximumf>, %19, %cst_17 [0] : vector<16x128xf32> to vector<128xf32>
    %21 = vector.shape_cast %20 : vector<128xf32> to vector<1x128xf32>
    %22 = vector.broadcast %21 : vector<1x128xf32> to vector<16x128xf32>
    %23 = arith.subf %19, %22 : vector<16x128xf32>
    %24 = math.exp %23 : vector<16x128xf32>
    %cst_18 = arith.constant dense<0.000000e+00> : vector<128xf32>
    %25 = vector.multi_reduction <add>, %24, %cst_18 [0] : vector<16x128xf32> to vector<128xf32>
    %26 = vector.shape_cast %25 : vector<128xf32> to vector<1x128xf32>
    %cst_19 = arith.constant 1.000000e+00 : f32
    %27 = vector.broadcast %cst_19 : f32 to vector<1x128xf32>
    %28 = arith.divf %27, %26 : vector<1x128xf32>
    %29 = vector.broadcast %28 : vector<1x128xf32> to vector<16x128xf32>
    %30 = arith.mulf %24, %29 : vector<16x128xf32>
    %c0_20 = arith.constant 0 : index
    %c0_21 = arith.constant 0 : index
    %31 = vector.load %arg8[%c0_20, %c0_21] : memref<16x128xf32, #tpu.memory_space<vmem>>, vector<16x128xf32>
    tpu.vector_store %arg8[%c0_20, %c0_21], %30 {strides = array<i32>} : memref<16x128xf32, #tpu.memory_space<vmem>>, vector<16x128xf32>,
    return
  }
  func.func @transform_0(%arg0: i32) -> (i32, i32) {
    %c0_i32 = arith.constant 0 : i32
    %c0_i32_0 = arith.constant 0 : i32
    return %c0_i32, %arg0 : i32, i32
  }
  func.func @transform_1(%arg0: i32) -> (i32, i32) {
    %c0_i32 = arith.constant 0 : i32
    %c0_i32_0 = arith.constant 0 : i32
    %c0_i32_1 = arith.constant 0 : i32
    return %c0_i32, %c0_i32_0 : i32, i32
  }
  func.func @transform_2(%arg0: i32) -> (i32, i32) {
    %c0_i32 = arith.constant 0 : i32
    %c0_i32_0 = arith.constant 0 : i32
    %c0_i32_1 = arith.constant 0 : i32
    return %c0_i32, %c0_i32_0 : i32, i32
  }
  func.func @transform_3(%arg0: i32) -> (i32, i32) {
    %c0_i32 = arith.constant 0 : i32
    %c0_i32_0 = arith.constant 0 : i32
    %c0_i32_1 = arith.constant 0 : i32
    return %c0_i32, %c0_i32_0 : i32, i32
  }
  func.func @transform_4(%arg0: i32) -> (i32, i32) {
    %c0_i32 = arith.constant 0 : i32
    %c0_i32_0 = arith.constant 0 : i32
    %c0_i32_1 = arith.constant 0 : i32
    return %c0_i32, %c0_i32_0 : i32, i32
  }
  func.func @transform_5(%arg0: i32) -> (i32, i32) {
    %c0_i32 = arith.constant 0 : i32
    %c0_i32_0 = arith.constant 0 : i32
    %c0_i32_1 = arith.constant 0 : i32
    return %c0_i32, %c0_i32_0 : i32, i32
  }
  func.func @transform_6(%arg0: i32) -> (i32, i32) {
    %c0_i32 = arith.constant 0 : i32
    %c0_i32_0 = arith.constant 0 : i32
    %c0_i32_1 = arith.constant 0 : i32
    return %c0_i32, %c0_i32_0 : i32, i32
  }
  func.func @transform_7(%arg0: i32) -> (i32, i32) {
    %c0_i32 = arith.constant 0 : i32
    %c0_i32_0 = arith.constant 0 : i32
    return %c0_i32, %arg0 : i32, i32
  }
}

</mosaic_0001>

<llo_original>
// kernel: tpu_custom_call.1
$region0: #{tpu_custom_call.1}
  #allocation0 [shape = 'u32[]', space=smem, size = 0x4, offset = 0x4, fixed_abs, tag = 'smem constant byte address 0x4 - core index']
  #allocation1 [shape = 'u32[72,128]{1,0:T(1,128)}', space=vmem, size = 0x9000, scoped, tag = 'internal scratch']
  %s0 = inlined_call_operand.vmem [shape: f32[8,128], index: 0, kind: input, shape index: {}]
  %s1 = inlined_call_operand.vmem [shape: f32[24,8], index: 1, kind: input, shape index: {}]
  %s2 = inlined_call_operand.vmem [shape: f32[24,1], index: 2, kind: input, shape index: {}]
  %s3 = inlined_call_operand.vmem [shape: f32[24,24], index: 3, kind: input, shape index: {}]
  %s4 = inlined_call_operand.vmem [shape: f32[24,1], index: 4, kind: input, shape index: {}]
  %s5 = inlined_call_operand.vmem [shape: f32[16,24], index: 5, kind: input, shape index: {}]
  %s6 = inlined_call_operand.vmem [shape: f32[16,1], index: 6, kind: input, shape index: {}]
  %s7 = inlined_call_operand.hbm [shape: f32[16,128], index: 7, kind: output, shape index: {}]
  %s8 = sld [smem:[#allocation0]]
  $region38: #{tpu_custom_call.1} parent=0
    _
  %s10 = ssub.s32 1, %s8
  %s11 = scalar_select 0, %s10, %s8
  $region1: #{tpu_custom_call.1} parent=0
    #allocation2 [shape = 'u8[8192]{0}', space=vmem, size = 0x2000, scoped, tag = 'output window, operand 0, single buffered']
    #allocation3 [shape = 's32[1]{0}', space=sflag, size = 0x4, scoped, tag = 'scoped memory for tpu_custom_call.1']
    %12 = vsyncpa [#allocation3], 0
    // Predicated region
    $region2: #{tpu_custom_call.1} parent=1 // pred_check
      _
    $region3: #{tpu_custom_call.1} parent=1 // pred_check_branch
      %14 = sbr.rel (0) target = $region5
    $region4: #{tpu_custom_call.1} parent=1 // pred_region
      _
    $region5: #{tpu_custom_call.1} parent=1 // pred_fallthru
      _
    // Predicated region
    $region6: #{tpu_custom_call.1} parent=1 // pred_check
      _
    $region7: #{tpu_custom_call.1} parent=1 // pred_check_branch
      %16 = sbr.rel (0) target = $region9
    $region8: #{tpu_custom_call.1} parent=1 // pred_region
      _
    $region9: #{tpu_custom_call.1} parent=1 // pred_fallthru
      _
    // Predicated region
    $region10: #{tpu_custom_call.1} parent=1 // pred_check
      _
    $region11: #{tpu_custom_call.1} parent=1 // pred_check_branch
      %18 = sbr.rel (0) target = $region13
    $region12: #{tpu_custom_call.1} parent=1 // pred_region
      _
    $region13: #{tpu_custom_call.1} parent=1 // pred_fallthru
      _
    // Predicated region
    $region14: #{tpu_custom_call.1} parent=1 // pred_check
      _
    $region15: #{tpu_custom_call.1} parent=1 // pred_check_branch
      %20 = sbr.rel (0) target = $region17
    $region16: #{tpu_custom_call.1} parent=1 // pred_region
      _
    $region17: #{tpu_custom_call.1} parent=1 // pred_fallthru
      _
    // Predicated region
    $region18: #{tpu_custom_call.1} parent=1 // pred_check
      _
    $region19: #{tpu_custom_call.1} parent=1 // pred_check_branch
      %22 = sbr.rel (0) target = $region21
    $region20: #{tpu_custom_call.1} parent=1 // pred_region
      _
    $region21: #{tpu_custom_call.1} parent=1 // pred_fallthru
      _
    // Predicated region
    $region22: #{tpu_custom_call.1} parent=1 // pred_check
      _
    $region23: #{tpu_custom_call.1} parent=1 // pred_check_branch
      %24 = sbr.rel (0) target = $region25
    $region24: #{tpu_custom_call.1} parent=1 // pred_region
      _
    $region25: #{tpu_custom_call.1} parent=1 // pred_fallthru
      _
    // Predicated region
    $region26: #{tpu_custom_call.1} parent=1 // pred_check
      _
    $region27: #{tpu_custom_call.1} parent=1 // pred_check_branch
      %26 = sbr.rel (0) target = $region29
    $region28: #{tpu_custom_call.1} parent=1 // pred_region
      _
    $region29: #{tpu_custom_call.1} parent=1 // pred_fallthru
      _
    %v27 = vld [vmem:[%s0] sm:$0xff]
    %v28 = vld [vmem:[%s1] sm:$0xff]
    %v29 = vld [vmem:[%s1 + $0x8] sm:$0xff]
    %v30 = vld [vmem:[%s1 + $0x10] sm:$0xff]
    %v31 = vld [vmem:[%s2] sm:$0xff]
    %v32 = vld [vmem:[%s2 + $0x8] sm:$0xff]
    %v33 = vld [vmem:[%s2 + $0x10] sm:$0xff]
    %35 = vset.pattern.permute.xlu0 0
    %36 = vperm.xlu0 %35, %v31
    %v37 = vpop.permute.xlu0 %36
    %40 = vset.pattern.permute.xlu0 0
    %41 = vperm.xlu0 %40, %v32
    %v42 = vpop.permute.xlu0 %41
    %45 = vset.pattern.permute.xlu0 0
    %46 = vperm.xlu0 %45, %v33
    %v47 = vpop.permute.xlu0 %46
    %vm49 = vcmask 64512
    %v51 = vsel %vm49, %v28, 0
    %v54 = vsel %vm49, %v29, 0
    %v57 = vsel %vm49, %v30, 0
    %59 = vmatpush.msra.mxu0 0.0
    %60 = vmatpush.msra.mxu0 0.0
    %61 = vmatpush.msra.mxu0 0.0
    %62 = vmatpush.msra.mxu0 0.0
    %63 = vmatpush.msra.mxu0 0.0
    %64 = vmatpush.msra.mxu0 0.0
    %65 = vmatpush.msra.mxu0 0.0
    %66 = vmatpush.msra.mxu0 0.0
    %67 = vmatpush.msra.mxu0 0.0
    %68 = vmatpush.msra.mxu0 0.0
    %69 = vmatpush.msra.mxu0 0.0
    %70 = vmatpush.msra.mxu0 0.0
    %71 = vmatpush.msra.mxu0 0.0
    %72 = vmatpush.msra.mxu0 0.0
    %73 = vmatpush.msra.mxu0 0.0
    %74 = vmatpush.msra.mxu0 %v27
    %75 = vmatmul.f32.gmra.mxu0 %v51
    %v76 = vpop.f32.mrf.mxu0
    %v77 = vadd.f32 %v37, %v76
    %78 = vmatmul.f32.gmra.mxu0 %v54
    %v79 = vpop.f32.mrf.mxu0
    %v80 = vadd.f32 %v42, %v79
    %81 = vmatmul.f32.gmra.mxu0 %v57
    %v82 = vpop.f32.mrf.mxu0
    %v83 = vadd.f32 %v47, %v82
    %84 = vdwg.mxu0
    %v85 = vmax.f32 %v77, 0.0
    %v86 = vmax.f32 %v80, 0.0
    %v87 = vmax.f32 %v83, 0.0
    %v88 = vld [vmem:[%s3] sm:$0xff]
    %v89 = vld [vmem:[%s3 + $0x8] sm:$0xff]
    %v90 = vld [vmem:[%s3 + $0x10] sm:$0xff]
    %v91 = vld [vmem:[%s4] sm:$0xff]
    %v92 = vld [vmem:[%s4 + $0x8] sm:$0xff]
    %v93 = vld [vmem:[%s4 + $0x10] sm:$0xff]
    %95 = vset.pattern.permute.xlu0 0
    %96 = vperm.xlu0 %95, %v91
    %v97 = vpop.permute.xlu0 %96
    %100 = vset.pattern.permute.xlu0 0
    %101 = vperm.xlu0 %100, %v92
    %v102 = vpop.permute.xlu0 %101
    %105 = vset.pattern.permute.xlu0 0
    %106 = vperm.xlu0 %105, %v93
    %v107 = vpop.permute.xlu0 %106
    %vm109 = vcmask 195584
    %v111 = vsel %vm109, %v88, 0
    %v114 = vsel %vm109, %v89, 0
    %v117 = vsel %vm109, %v90, 0
    %119 = vmatpush.msra.mxu0 0.0
    %120 = vmatpush.msra.mxu0 0.0
    %121 = vmatpush.msra.mxu0 0.0
    %122 = vmatpush.msra.mxu0 0.0
    %123 = vmatpush.msra.mxu0 0.0
    %124 = vmatpush.msra.mxu0 0.0
    %125 = vmatpush.msra.mxu0 0.0
    %126 = vmatpush.msra.mxu0 0.0
    %127 = vmatpush.msra.mxu0 0.0
    %128 = vmatpush.msra.mxu0 0.0
    %129 = vmatpush.msra.mxu0 0.0
    %130 = vmatpush.msra.mxu0 0.0
    %131 = vmatpush.msra.mxu0 0.0
    %132 = vmatpush.msra.mxu0 %v87
    %133 = vmatpush.msra.mxu0 %v86
    %134 = vmatpush.msra.mxu0 %v85
    %135 = vmatmul.f32.gmra.mxu0 %v111
    %v136 = vpop.f32.mrf.mxu0
    %v137 = vadd.f32 %v97, %v136
    %138 = vmatmul.f32.gmra.mxu0 %v114
    %v139 = vpop.f32.mrf.mxu0
    %v140 = vadd.f32 %v102, %v139
    %141 = vmatmul.f32.gmra.mxu0 %v117
    %v142 = vpop.f32.mrf.mxu0
    %v143 = vadd.f32 %v107, %v142
    %144 = vdwg.mxu0
    %v145 = vmax.f32 %v137, 0.0
    %v146 = vmax.f32 %v140, 0.0
    %v147 = vmax.f32 %v143, 0.0
    %v148 = vld [vmem:[%s5] sm:$0xff]
    %v149 = vld [vmem:[%s5 + $0x8] sm:$0xff]
    %v150 = vld [vmem:[%s6] sm:$0xff]
    %v151 = vld [vmem:[%s6 + $0x8] sm:$0xff]
    %153 = vset.pattern.permute.xlu0 0
    %154 = vperm.xlu0 %153, %v150
    %v155 = vpop.permute.xlu0 %154
    %158 = vset.pattern.permute.xlu0 0
    %159 = vperm.xlu0 %158, %v151
    %v160 = vpop.permute.xlu0 %159
    %v163 = vsel %vm109, %v148, 0
    %v166 = vsel %vm109, %v149, 0
    %168 = vmatpush.msra.mxu0 0.0
    %169 = vmatpush.msra.mxu0 0.0
    %170 = vmatpush.msra.mxu0 0.0
    %171 = vmatpush.msra.mxu0 0.0
    %172 = vmatpush.msra.mxu0 0.0
    %173 = vmatpush.msra.mxu0 0.0
    %174 = vmatpush.msra.mxu0 0.0
    %175 = vmatpush.msra.mxu0 0.0
    %176 = vmatpush.msra.mxu0 0.0
    %177 = vmatpush.msra.mxu0 0.0
    %178 = vmatpush.msra.mxu0 0.0
    %179 = vmatpush.msra.mxu0 0.0
    %180 = vmatpush.msra.mxu0 0.0
    %181 = vmatpush.msra.mxu0 %v147
    %182 = vmatpush.msra.mxu0 %v146
    %183 = vmatpush.msra.mxu0 %v145
    %184 = vmatmul.f32.gmra.mxu0 %v163
    %v185 = vpop.f32.mrf.mxu0
    %v186 = vadd.f32 %v155, %v185
    %187 = vmatmul.f32.gmra.mxu0 %v166
    %v188 = vpop.f32.mrf.mxu0
    %v189 = vadd.f32 %v160, %v188
    %190 = vdwg.mxu0
    %v191 = vmax.f32 %v186, %v189
    %v192 = vrot.slane %v191, 4
    %v193 = vmax.f32 %v191, %v192
    %v194 = vrot.slane %v193, 2
    %v195 = vmax.f32 %v193, %v194
    %v196 = vrot.slane %v195, 1
    %v197 = vmax.f32 %v195, %v196
    %v198 = vsub.f32 %v186, %v197
    %v199 = vsub.f32 %v189, %v197
    %v200 = vmul.f32 %v198, 1.442695
    %v201 = vpow.pop %v200
    %v202 = vmul.f32 %v199, 1.442695
    %v203 = vpow.pop %v202
    %v204 = vadd.f32 %v201, %v203
    %v205 = vrot.slane %v204, 4
    %v206 = vadd.f32 %v204, %v205
    %v207 = vrot.slane %v206, 2
    %v208 = vadd.f32 %v206, %v207
    %v209 = vrot.slane %v208, 1
    %v210 = vadd.f32 %v208, %v209
    %v211 = vrcp.pop %v210
    %v212 = vmul.f32 %v210, %v211
    %v213 = vsub.f32 1.0, %v212
    %v214 = vmul.f32 %v211, %v213
    %v215 = vadd.f32 %v211, %v214
    %vm216 = vweird.f32 %v210
    %vm217 = vweird.f32 %v211
    %vm218 = vmor %vm216, %vm217
    %v219 = vsel %vm218, %v211, %v215
    %v220 = vand.u32 2147483647, %v210
    %vm221 = vcmp.eq.f32.partialorder %v220, 8.507059e+37
    %v222 = vand.u32 %v210, 2147483648
    %v223 = vor.u32 1.1754944e-38, %v222
    %v224 = vsel %vm221, %v223, %v219
    %v225 = vmul.f32 1.0, %v224
    %v226 = vmul.f32 %v201, %v225
    %v227 = vmul.f32 %v203, %v225
    %228 = vst [vmem:[#allocation2] sm:$0xff] %v226
    %229 = vst [vmem:[#allocation2 + $0x8] sm:$0xff] %v227
    // Predicated region
    $region30: #{tpu_custom_call.1} parent=1 // pred_check
      _
    $region31: #{tpu_custom_call.1} parent=1 // pred_check_branch
      %231 = sbr.rel (0) target = $region33
    $region32: #{tpu_custom_call.1} parent=1 // pred_region
      %233 = vsyncadd [#allocation3], 0
      %s234 = sshll.u32 [#allocation2], 4
      %s235 = int_to_ptr.vmem [resolvable:$true] %s234
      %s236 = sshll.u32 %s7, 4
      %s237 = int_to_ptr.hbm [resolvable:$true] %s236
      %242 = dma.vmem_to_hbm [thread:$0]  %s235, 256, %s237, [#allocation3], 128, 128, 8
    $region33: #{tpu_custom_call.1} parent=1 // pred_fallthru
      _
    // Predicated region
    $region34: #{tpu_custom_call.1} parent=1 // pred_check
      _
    $region35: #{tpu_custom_call.1} parent=1 // pred_check_branch
      %244 = sbr.rel (0) target = $region37
    $region36: #{tpu_custom_call.1} parent=1 // pred_region
      %246 = dma.done [#allocation3], 256
    $region37: #{tpu_custom_call.1} parent=1 // pred_fallthru
      _
    %247 = vsyncpa [#allocation3], 1

</llo_original>
